<compile_context>
chip_gen: v5e
topology: v5e:2x2
jax: 0.10.0
libtpu: 0.0.40
codegen_flags: <defaults>
</compile_context>

<pallas_src>
import functools

import jax
import jax.numpy as jnp
from jax.experimental import pallas as pl
from jax.experimental.pallas import tpu as pltpu


def _round_up(n, m):
    return ((n + m - 1) // m) * m


def mlp_kernel(x_ref, w1_ref, b1_ref, w2sm_ref, w2sem_ref, b2_ref,
               w3_ref, b3_ref, out_ref, *, compute_dtype):
    """Fused forward pass.

    x_ref     : (TB, 17) caller dtype (f32) -- natural layout straight from HBM
    w1_ref    : (3, 17)  compute_dtype      -- semantic Linear(10,3), zero-padded over feats 0:7
    w2sm_ref  : (10, 17) compute_dtype      -- W2^T spectrum+mutation cols, zero-padded over 7:17
    w2sem_ref : (10, 3)  compute_dtype      -- W2^T semantic-branch cols
    w3_ref    : (2, 10)  compute_dtype      -- output Linear(10,2), stored (out, in)
    b*_ref    : (out, 1) float32
    out_ref   : (2, TB)  out dtype          -- batch on lanes (lane-dense stores)
    """
    x = x_ref[...]                                   # (TB, 17)
    if x.dtype != compute_dtype:
        x = x.astype(compute_dtype)                  # cast BEFORE transpose (fewer XLU granules)
    xt = jnp.transpose(x)                            # (17, TB), batch on the 128-wide lane axis

    # semantic branch: ReLU(W1 @ semantic + b1); dropout = identity (eval mode).
    # w1 is zero-padded over features 0:7, so no slicing of xt is needed.
    h_sem = jnp.dot(w1_ref[...], xt,
                    preferred_element_type=jnp.float32) + b1_ref[...]
    h_sem = jnp.maximum(h_sem, 0.0)                  # (3, TB) f32
    h_sem_c = h_sem if h_sem.dtype == compute_dtype else h_sem.astype(compute_dtype)

    # all-features layer: concat realized as two partial matmuls (w2sm zero-padded
    # over the semantic columns, so again the full xt is used unsliced).
    z = (jnp.dot(w2sm_ref[...], xt, preferred_element_type=jnp.float32)
         + jnp.dot(w2sem_ref[...], h_sem_c, preferred_element_type=jnp.float32)
         + b2_ref[...])
    h = jnp.maximum(z, 0.0)                          # (10, TB) f32
    h_c = h if h.dtype == compute_dtype else h.astype(compute_dtype)

    # output layer: Linear(10, 2)
    out = jnp.dot(w3_ref[...], h_c,
                  preferred_element_type=jnp.float32) + b3_ref[...]
    out_ref[...] = out.astype(out_ref.dtype)         # (2, TB), lane-dense store


def mlp_reference(x, w1, b1, w2, b2, w3, b3):
    """Pure-JAX reference of the PyTorch forward (dropout = identity)."""
    spectrum = x[:, 0:3]
    mutation = x[:, 3:7]
    semantic = x[:, 7:]
    h_sem = jax.nn.relu(semantic @ w1 + b1)
    all_feat = jnp.concatenate([spectrum, mutation, h_sem], axis=-1)
    h = jax.nn.relu(all_feat @ w2 + b2)
    return h @ w3 + b3


@functools.partial(jax.jit, static_argnames=("block_b", "compute_dtype",
                                             "out_dtype", "min_pallas_batch"))
def mlp_forward(x, w1, b1, w2, b2, w3, b3, *,
                block_b=16384,
                compute_dtype=jnp.float32,
                out_dtype=None,
                min_pallas_batch=4096):
    """Forward pass. x: (B, 17); weights stored (in, out); biases (1, out)."""
    B, F = x.shape
    assert F == 17, "expected 3 spectrum + 4 mutation + 10 semantic features"
    od = x.dtype if out_dtype is None else out_dtype

    # Small / medium batches: kernel launch + layout work would dominate.
    if B < min_pallas_batch:
        return mlp_reference(x, w1, b1, w2, b2, w3, b3).astype(od)

    cd = compute_dtype
    # Tiny resident operands (prepared once per call, negligible cost).
    w1f   = jnp.pad(w1.T, ((0, 0), (7, 0))).astype(cd)          # (3, 17)
    w2smf = jnp.pad(w2[:7, :].T, ((0, 0), (0, 10))).astype(cd)  # (10, 17)
    w2sem = w2[7:, :].T.astype(cd)                               # (10, 3)
    w3t   = w3.T.astype(cd)                                      # (2, 10)
    b1c = b1.reshape(-1, 1).astype(jnp.float32)                  # (3, 1)
    b2c = b2.reshape(-1, 1).astype(jnp.float32)                  # (10, 1)
    b3c = b3.reshape(-1, 1).astype(jnp.float32)                  # (2, 1)

    # Batch tile (rows).  No padding of x: ragged last block via cdiv grid.
    TB = _round_up(min(block_b, B), 128)
    grid = (pl.cdiv(B, TB),)

    kernel = functools.partial(mlp_kernel, compute_dtype=cd)

    out_t = pl.pallas_call(
        kernel,
        out_shape=jax.ShapeDtypeStruct((2, B), od),
        grid=grid,
        in_specs=[
            pl.BlockSpec((TB, 17), lambda i: (i, 0)),   # x tile (streamed, pipelined)
            pl.BlockSpec((3, 17),  lambda i: (0, 0)),   # w1 (padded, resident)
            pl.BlockSpec((3, 1),   lambda i: (0, 0)),   # b1
            pl.BlockSpec((10, 17), lambda i: (0, 0)),   # w2 spectrum+mutation cols (padded)
            pl.BlockSpec((10, 3),  lambda i: (0, 0)),   # w2 semantic cols
            pl.BlockSpec((10, 1),  lambda i: (0, 0)),   # b2
            pl.BlockSpec((2, 10),  lambda i: (0, 0)),   # w3
            pl.BlockSpec((2, 1),   lambda i: (0, 0)),   # b3
        ],
        out_specs=pl.BlockSpec((2, TB), lambda i: (0, i)),
        compiler_params=pltpu.CompilerParams(
            dimension_semantics=("parallel",),          # shard batch tiles across TCs (v7x)
            vmem_limit_bytes=48 * 1024 * 1024,          # double-buffered (TB,17) + temps < 48 MiB
        ),
    )(x, w1f, b1c, w2smf, w2sem, b2c, w3t, b3c)

    # (2, B) -> (B, 2). Output is <12% of total HBM traffic; one tiny XLA
    # transpose here beats lane-sparse (TB, 2) stores inside the kernel.
    return out_t.T


def init_params(key):
    """Parameter init mirroring nn.Linear (stored (in, out): reference does x @ W + b)."""
    ks = jax.random.split(key, 6)

    def uniform(k, shape, fan_in):
        bound = 1.0 / jnp.sqrt(float(fan_in))
        return jax.random.uniform(k, shape, jnp.float32, -bound, bound)

    w1 = uniform(ks[0], (10, 3), 10)    # mlp_semantic
    b1 = uniform(ks[1], (1, 3), 10)
    w2 = uniform(ks[2], (10, 10), 10)   # mlp_all_features
    b2 = uniform(ks[3], (1, 10), 10)
    w3 = uniform(ks[4], (10, 2), 10)    # output_layer
    b3 = uniform(ks[5], (1, 2), 10)
    return w1, b1, w2, b2, w3, b3


if __name__ == "__main__":
    key = jax.random.PRNGKey(0)
    k_x, k_p = jax.random.split(key)
    params = init_params(k_p)

    # Small demo batch, deliberately NOT a multiple of the tile so the ragged
    # last block (no jnp.pad) and the multi-step grid are exercised.
    B = 300
    x = jax.random.normal(k_x, (B, 17), dtype=jnp.float32)

    ref = mlp_reference(x, *params)

    # 1) Default f32 Pallas path (3 grid steps: 128 + 128 + ragged 44).
    #    Tolerance covers possible MXU default-precision rounding of f32 operands.
    out = jax.block_until_ready(
        mlp_forward(x, *params, block_b=128, min_pallas_batch=0))
    assert out.shape == (B, 2)
    assert jnp.allclose(out, ref, atol=2e-2, rtol=2e-2), "f32 kernel mismatch"

    # 2) bf16 writeback path (caller-requested output dtype).
    out_bf16 = jax.block_until_ready(
        mlp_forward(x, *params, block_b=128, min_pallas_batch=0,
                    out_dtype=jnp.bfloat16))
    assert out_bf16.dtype == jnp.bfloat16
    assert jnp.allclose(out_bf16.astype(jnp.float32), ref,
                        atol=5e-2, rtol=5e-2), "bf16-out kernel mismatch"

    # 3) Tiny-batch fallback path (pure JAX, no pallas_call).
    x_small = x[:8]
    out_small = jax.block_until_ready(mlp_forward(x_small, *params))
    assert jnp.allclose(out_small, mlp_reference(x_small, *params),
                        atol=1e-4, rtol=1e-4), "fallback mismatch"

    print("KERNEL_OK")
</pallas_src>

<mosaic_0001>
module attributes {stable_mosaic.version = 11 : i64} {
  func.func @mlp_kernel(%arg0: i32, %arg1: memref<128x17xf32, #tpu.memory_space<vmem>>, %arg2: memref<3x17xf32, #tpu.memory_space<vmem>>, %arg3: memref<3x1xf32, #tpu.memory_space<vmem>>, %arg4: memref<10x17xf32, #tpu.memory_space<vmem>>, %arg5: memref<10x3xf32, #tpu.memory_space<vmem>>, %arg6: memref<10x1xf32, #tpu.memory_space<vmem>>, %arg7: memref<2x10xf32, #tpu.memory_space<vmem>>, %arg8: memref<2x1xf32, #tpu.memory_space<vmem>>, %arg9: memref<2x128xf32, #tpu.memory_space<vmem>>) attributes {dimension_semantics = [#tpu.dimension_semantics<parallel>], iteration_bounds = array<i64: 3>, scalar_prefetch = 0 : i64, scratch_operands = 0 : i64, tpu.core_type = #tpu.core_type<tc>, window_params = [{transform_indices = @transform_0, window_bounds = array<i64: 128, 17>}, {pipeline_mode = #tpu.pipeline_mode<synchronous>, transform_indices = @transform_1, window_bounds = array<i64: 3, 17>}, {pipeline_mode = #tpu.pipeline_mode<synchronous>, transform_indices = @transform_2, window_bounds = array<i64: 3, 1>}, {pipeline_mode = #tpu.pipeline_mode<synchronous>, transform_indices = @transform_3, window_bounds = array<i64: 10, 17>}, {pipeline_mode = #tpu.pipeline_mode<synchronous>, transform_indices = @transform_4, window_bounds = array<i64: 10, 3>}, {pipeline_mode = #tpu.pipeline_mode<synchronous>, transform_indices = @transform_5, window_bounds = array<i64: 10, 1>}, {pipeline_mode = #tpu.pipeline_mode<synchronous>, transform_indices = @transform_6, window_bounds = array<i64: 2, 10>}, {pipeline_mode = #tpu.pipeline_mode<synchronous>, transform_indices = @transform_7, window_bounds = array<i64: 2, 1>}, {transform_indices = @transform_8, window_bounds = array<i64: 2, 128>}]} {
    %c0 = arith.constant 0 : index
    %c0_0 = arith.constant 0 : index
    %0 = vector.load %arg1[%c0, %c0_0] : memref<128x17xf32, #tpu.memory_space<vmem>>, vector<128x17xf32>
    %1 = tpu.transpose %0, [1, 0] : vector<128x17xf32> -> vector<17x128xf32>
    %c0_1 = arith.constant 0 : index
    %c0_2 = arith.constant 0 : index
    %2 = vector.load %arg2[%c0_1, %c0_2] : memref<3x17xf32, #tpu.memory_space<vmem>>, vector<3x17xf32>
    %cst = arith.constant dense<0.000000e+00> : vector<3x128xf32>
    %3 = tpu.matmul %2, %1, %cst {dimension_numbers = #tpu.dot_dimension_numbers<[1], [0], [0], [1], [0, 0, 1, 1], [], []>} : vector<3x17xf32>, vector<17x128xf32>, vector<3x128xf32> -> vector<3x128xf32>
    %c0_3 = arith.constant 0 : index
    %c0_4 = arith.constant 0 : index
    %4 = vector.load %arg3[%c0_3, %c0_4] : memref<3x1xf32, #tpu.memory_space<vmem>>, vector<3x1xf32>
    %5 = vector.broadcast %4 : vector<3x1xf32> to vector<3x128xf32>
    %6 = arith.addf %3, %5 : vector<3x128xf32>
    %cst_5 = arith.constant 0.000000e+00 : f32
    %7 = vector.broadcast %cst_5 : f32 to vector<3x128xf32>
    %8 = arith.maximumf %6, %7 : vector<3x128xf32>
    %c0_6 = arith.constant 0 : index
    %c0_7 = arith.constant 0 : index
    %9 = vector.load %arg4[%c0_6, %c0_7] : memref<10x17xf32, #tpu.memory_space<vmem>>, vector<10x17xf32>
    %cst_8 = arith.constant dense<0.000000e+00> : vector<10x128xf32>
    %10 = tpu.matmul %9, %1, %cst_8 {dimension_numbers = #tpu.dot_dimension_numbers<[1], [0], [0], [1], [0, 0, 1, 1], [], []>} : vector<10x17xf32>, vector<17x128xf32>, vector<10x128xf32> -> vector<10x128xf32>
    %c0_9 = arith.constant 0 : index
    %c0_10 = arith.constant 0 : index
    %11 = vector.load %arg5[%c0_9, %c0_10] : memref<10x3xf32, #tpu.memory_space<vmem>>, vector<10x3xf32>
    %cst_11 = arith.constant dense<0.000000e+00> : vector<10x128xf32>
    %12 = tpu.matmul %11, %8, %cst_11 {dimension_numbers = #tpu.dot_dimension_numbers<[1], [0], [0], [1], [0, 0, 1, 1], [], []>} : vector<10x3xf32>, vector<3x128xf32>, vector<10x128xf32> -> vector<10x128xf32>
    %13 = arith.addf %10, %12 : vector<10x128xf32>
    %c0_12 = arith.constant 0 : index
    %c0_13 = arith.constant 0 : index
    %14 = vector.load %arg6[%c0_12, %c0_13] : memref<10x1xf32, #tpu.memory_space<vmem>>, vector<10x1xf32>
    %15 = vector.broadcast %14 : vector<10x1xf32> to vector<10x128xf32>
    %16 = arith.addf %13, %15 : vector<10x128xf32>
    %cst_14 = arith.constant 0.000000e+00 : f32
    %17 = vector.broadcast %cst_14 : f32 to vector<10x128xf32>
    %18 = arith.maximumf %16, %17 : vector<10x128xf32>
    %c0_15 = arith.constant 0 : index
    %c0_16 = arith.constant 0 : index
    %19 = vector.load %arg7[%c0_15, %c0_16] : memref<2x10xf32, #tpu.memory_space<vmem>>, vector<2x10xf32>
    %cst_17 = arith.constant dense<0.000000e+00> : vector<2x128xf32>
    %20 = tpu.matmul %19, %18, %cst_17 {dimension_numbers = #tpu.dot_dimension_numbers<[1], [0], [0], [1], [0, 0, 1, 1], [], []>} : vector<2x10xf32>, vector<10x128xf32>, vector<2x128xf32> -> vector<2x128xf32>
    %c0_18 = arith.constant 0 : index
    %c0_19 = arith.constant 0 : index
    %21 = vector.load %arg8[%c0_18, %c0_19] : memref<2x1xf32, #tpu.memory_space<vmem>>, vector<2x1xf32>
    %22 = vector.broadcast %21 : vector<2x1xf32> to vector<2x128xf32>
    %23 = arith.addf %20, %22 : vector<2x128xf32>
    %c0_20 = arith.constant 0 : index
    %c0_21 = arith.constant 0 : index
    %24 = vector.load %arg9[%c0_20, %c0_21] : memref<2x128xf32, #tpu.memory_space<vmem>>, vector<2x128xf32>
    tpu.vector_store %arg9[%c0_20, %c0_21], %23 {strides = array<i32>} : memref<2x128xf32, #tpu.memory_space<vmem>>, vector<2x128xf32>,
    return
  }
  func.func @transform_0(%arg0: i32) -> (i32, i32) {
    %c0_i32 = arith.constant 0 : i32
    %c0_i32_0 = arith.constant 0 : i32
    return %arg0, %c0_i32 : i32, i32
  }
  func.func @transform_1(%arg0: i32) -> (i32, i32) {
    %c0_i32 = arith.constant 0 : i32
    %c0_i32_0 = arith.constant 0 : i32
    %c0_i32_1 = arith.constant 0 : i32
    return %c0_i32, %c0_i32_0 : i32, i32
  }
  func.func @transform_2(%arg0: i32) -> (i32, i32) {
    %c0_i32 = arith.constant 0 : i32
    %c0_i32_0 = arith.constant 0 : i32
    %c0_i32_1 = arith.constant 0 : i32
    return %c0_i32, %c0_i32_0 : i32, i32
  }
  func.func @transform_3(%arg0: i32) -> (i32, i32) {
    %c0_i32 = arith.constant 0 : i32
    %c0_i32_0 = arith.constant 0 : i32
    %c0_i32_1 = arith.constant 0 : i32
    return %c0_i32, %c0_i32_0 : i32, i32
  }
  func.func @transform_4(%arg0: i32) -> (i32, i32) {
    %c0_i32 = arith.constant 0 : i32
    %c0_i32_0 = arith.constant 0 : i32
    %c0_i32_1 = arith.constant 0 : i32
    return %c0_i32, %c0_i32_0 : i32, i32
  }
  func.func @transform_5(%arg0: i32) -> (i32, i32) {
    %c0_i32 = arith.constant 0 : i32
    %c0_i32_0 = arith.constant 0 : i32
    %c0_i32_1 = arith.constant 0 : i32
    return %c0_i32, %c0_i32_0 : i32, i32
  }
  func.func @transform_6(%arg0: i32) -> (i32, i32) {
    %c0_i32 = arith.constant 0 : i32
    %c0_i32_0 = arith.constant 0 : i32
    %c0_i32_1 = arith.constant 0 : i32
    return %c0_i32, %c0_i32_0 : i32, i32
  }
  func.func @transform_7(%arg0: i32) -> (i32, i32) {
    %c0_i32 = arith.constant 0 : i32
    %c0_i32_0 = arith.constant 0 : i32
    %c0_i32_1 = arith.constant 0 : i32
    return %c0_i32, %c0_i32_0 : i32, i32
  }
  func.func @transform_8(%arg0: i32) -> (i32, i32) {
    %c0_i32 = arith.constant 0 : i32
    %c0_i32_0 = arith.constant 0 : i32
    return %c0_i32, %arg0 : i32, i32
  }
}

</mosaic_0001>

<llo_original>
// kernel: mlp_forward.1
$region0: #{mlp_forward.1}
  #allocation0 [shape = 'u32[]', space=smem, size = 0x4, offset = 0x4, fixed_abs, tag = 'smem constant byte address 0x4 - core index']
  #allocation1 [shape = 'u32[72,128]{1,0:T(1,128)}', space=vmem, size = 0x9000, scoped, tag = 'internal scratch']
  %s0 = inlined_call_operand.vmem [shape: f32[300,17], index: 0, kind: input, shape index: {}]
  %s1 = inlined_call_operand.vmem [shape: f32[3,17], index: 1, kind: input, shape index: {}]
  %s2 = inlined_call_operand.vmem [shape: f32[3,1], index: 2, kind: input, shape index: {}]
  %s3 = inlined_call_operand.vmem [shape: f32[10,17], index: 3, kind: input, shape index: {}]
  %s4 = inlined_call_operand.vmem [shape: f32[10,3], index: 4, kind: input, shape index: {}]
  %s5 = inlined_call_operand.vmem [shape: f32[10,1], index: 5, kind: input, shape index: {}]
  %s6 = inlined_call_operand.vmem [shape: f32[2,10], index: 6, kind: input, shape index: {}]
  %s7 = inlined_call_operand.vmem [shape: f32[2,1], index: 7, kind: input, shape index: {}]
  %s8 = inlined_call_operand.hbm [shape: f32[2,300], index: 8, kind: output, shape index: {}]
  %s9 = sld [smem:[#allocation0]]
  $region65: #{mlp_forward.1} parent=0
    _
  %s11 = ssub.s32 1, %s9
  %s12 = scalar_select 0, %s11, %s9
  $region1: #{mlp_forward.1} parent=0
    #allocation2 [shape = 'u8[2048]{0}', space=vmem, size = 0x800, scoped, tag = 'output window, operand 0']
    #allocation3 [shape = 's32[2]{0}', space=sflag, size = 0x8, scoped, tag = 'scoped memory for mlp_forward.1']
    %13 = vsyncpa [#allocation3], 0
    %s14 = scalar_lea.sflag [#allocation3], 1
    %15 = vsyncpa %s14, 0
    loop: start=0, step=1, limit=5
    $region2: #{mlp_forward.1} parent=1 // loop_pre_header
      _
    $region3: #{mlp_forward.1} parent=1 // loop_header
      %s17 = sphi 0, %s21
      %p18 = scmp.ge.s32.totalorder %s17, 5
      %s27 = sphi 0, %s29
      %s30 = sphi 0, %s27
      %s31 = sphi 0, %s30
      %s47 = sphi 0, %s31
      %s51 = sphi 0, %s51
      %s53 = sphi 0, %s51
      %s54 = sphi 0, %s53
      %s68 = sphi 0, %s54
      %s72 = sphi 0, %s72
      %s74 = sphi 0, %s72
      %s75 = sphi 0, %s74
      %s89 = sphi 0, %s75
      %s93 = sphi 0, %s93
      %s95 = sphi 0, %s93
      %s96 = sphi 0, %s95
      %s110 = sphi 0, %s96
      %s114 = sphi 0, %s114
      %s116 = sphi 0, %s114
      %s117 = sphi 0, %s116
      %s131 = sphi 0, %s117
      %s135 = sphi 0, %s135
      %s137 = sphi 0, %s135
      %s138 = sphi 0, %s137
      %s152 = sphi 0, %s138
      %s156 = sphi 0, %s156
      %s158 = sphi 0, %s156
      %s159 = sphi 0, %s158
      %s173 = sphi 0, %s159
      %s177 = sphi 0, %s177
      %s179 = sphi 0, %s177
      %s180 = sphi 0, %s179
      %s194 = sphi 0, %s180
      %s200 = sphi 0, %s202
      %s203 = sphi 0, %s200
      %s204 = sphi 0, %s203
      %s220 = sphi 0, %s204
    $region4: #{mlp_forward.1} parent=1 // loop_header_branch
      %20 = sbr.rel (%p18) target = $region8
    $region5: #{mlp_forward.1} parent=1 // loop_body
      %s22 = ssub.s32 %s17, 1
      %s23 = ssub.s32 %s17, 2
      %s24 = sadd.s32 %s17, 1
      %s25 = ssub.s32 %s17, %s24
      %p26 = scmp.eq.s32.totalorder %s25, 0
      %s28 = sadd.s32 %s27, 1
      %s29 = scalar_select %p26, %s27, %s28
      %p32 = pneg %p26
      %p33 = scmp.eq.s32.totalorder %s17, 2
      %p34 = por %p32, %p33
      %p35 = scmp.ne.s32.totalorder %s27, %s30
      %p36 = scmp.eq.s32.totalorder %s17, 0
      %p37 = por %p35, %p36
      %p38 = scmp.ne.s32.totalorder %s27, %s30
      %p39 = scmp.eq.s32.totalorder %s22, 2
      %p40 = por %p38, %p39
      %p41 = scmp.ne.s32.totalorder %s30, %s31
      %p42 = scmp.eq.s32.totalorder %s22, 0
      %p43 = por %p41, %p42
      %p44 = scmp.ne.s32.totalorder %s30, %s31
      %p45 = scmp.eq.s32.totalorder %s23, 2
      %p46 = por %p44, %p45
      %p48 = scmp.ne.s32.totalorder %s31, %s47
      %p49 = scmp.eq.s32.totalorder %s23, 0
      %p50 = por %p48, %p49
      %s52 = sadd.s32 %s51, 1
      %p55 = scmp.eq.s32.totalorder %s17, 2
      %p56 = scmp.ne.s32.totalorder %s51, %s53
      %p57 = scmp.eq.s32.totalorder %s17, 0
      %p58 = por %p56, %p57
      %p59 = scmp.ne.s32.totalorder %s51, %s53
      %p60 = scmp.eq.s32.totalorder %s22, 2
      %p61 = por %p59, %p60
      %p62 = scmp.ne.s32.totalorder %s53, %s54
      %p63 = scmp.eq.s32.totalorder %s22, 0
      %p64 = por %p62, %p63
      %p65 = scmp.ne.s32.totalorder %s53, %s54
      %p66 = scmp.eq.s32.totalorder %s23, 2
      %p67 = por %p65, %p66
      %p69 = scmp.ne.s32.totalorder %s54, %s68
      %p70 = scmp.eq.s32.totalorder %s23, 0
      %p71 = por %p69, %p70
      %s73 = sadd.s32 %s72, 1
      %p76 = scmp.eq.s32.totalorder %s17, 2
      %p77 = scmp.ne.s32.totalorder %s72, %s74
      %p78 = scmp.eq.s32.totalorder %s17, 0
      %p79 = por %p77, %p78
      %p80 = scmp.ne.s32.totalorder %s72, %s74
      %p81 = scmp.eq.s32.totalorder %s22, 2
      %p82 = por %p80, %p81
      %p83 = scmp.ne.s32.totalorder %s74, %s75
      %p84 = scmp.eq.s32.totalorder %s22, 0
      %p85 = por %p83, %p84
      %p86 = scmp.ne.s32.totalorder %s74, %s75
      %p87 = scmp.eq.s32.totalorder %s23, 2
      %p88 = por %p86, %p87
      %p90 = scmp.ne.s32.totalorder %s75, %s89
      %p91 = scmp.eq.s32.totalorder %s23, 0
      %p92 = por %p90, %p91
      %s94 = sadd.s32 %s93, 1
      %p97 = scmp.eq.s32.totalorder %s17, 2
      %p98 = scmp.ne.s32.totalorder %s93, %s95
      %p99 = scmp.eq.s32.totalorder %s17, 0
      %p100 = por %p98, %p99
      %p101 = scmp.ne.s32.totalorder %s93, %s95
      %p102 = scmp.eq.s32.totalorder %s22, 2
      %p103 = por %p101, %p102
      %p104 = scmp.ne.s32.totalorder %s95, %s96
      %p105 = scmp.eq.s32.totalorder %s22, 0
      %p106 = por %p104, %p105
      %p107 = scmp.ne.s32.totalorder %s95, %s96
      %p108 = scmp.eq.s32.totalorder %s23, 2
      %p109 = por %p107, %p108
      %p111 = scmp.ne.s32.totalorder %s96, %s110
      %p112 = scmp.eq.s32.totalorder %s23, 0
      %p113 = por %p111, %p112
      %s115 = sadd.s32 %s114, 1
      %p118 = scmp.eq.s32.totalorder %s17, 2
      %p119 = scmp.ne.s32.totalorder %s114, %s116
      %p120 = scmp.eq.s32.totalorder %s17, 0
      %p121 = por %p119, %p120
      %p122 = scmp.ne.s32.totalorder %s114, %s116
      %p123 = scmp.eq.s32.totalorder %s22, 2
      %p124 = por %p122, %p123
      %p125 = scmp.ne.s32.totalorder %s116, %s117
      %p126 = scmp.eq.s32.totalorder %s22, 0
      %p127 = por %p125, %p126
      %p128 = scmp.ne.s32.totalorder %s116, %s117
      %p129 = scmp.eq.s32.totalorder %s23, 2
      %p130 = por %p128, %p129
      %p132 = scmp.ne.s32.totalorder %s117, %s131
      %p133 = scmp.eq.s32.totalorder %s23, 0
      %p134 = por %p132, %p133
      %s136 = sadd.s32 %s135, 1
      %p139 = scmp.eq.s32.totalorder %s17, 2
      %p140 = scmp.ne.s32.totalorder %s135, %s137
      %p141 = scmp.eq.s32.totalorder %s17, 0
      %p142 = por %p140, %p141
      %p143 = scmp.ne.s32.totalorder %s135, %s137
      %p144 = scmp.eq.s32.totalorder %s22, 2
      %p145 = por %p143, %p144
      %p146 = scmp.ne.s32.totalorder %s137, %s138
      %p147 = scmp.eq.s32.totalorder %s22, 0
      %p148 = por %p146, %p147
      %p149 = scmp.ne.s32.totalorder %s137, %s138
      %p150 = scmp.eq.s32.totalorder %s23, 2
      %p151 = por %p149, %p150
      %p153 = scmp.ne.s32.totalorder %s138, %s152
      %p154 = scmp.eq.s32.totalorder %s23, 0
      %p155 = por %p153, %p154
      %s157 = sadd.s32 %s156, 1
      %p160 = scmp.eq.s32.totalorder %s17, 2
      %p161 = scmp.ne.s32.totalorder %s156, %s158
      %p162 = scmp.eq.s32.totalorder %s17, 0
      %p163 = por %p161, %p162
      %p164 = scmp.ne.s32.totalorder %s156, %s158
      %p165 = scmp.eq.s32.totalorder %s22, 2
      %p166 = por %p164, %p165
      %p167 = scmp.ne.s32.totalorder %s158, %s159
      %p168 = scmp.eq.s32.totalorder %s22, 0
      %p169 = por %p167, %p168
      %p170 = scmp.ne.s32.totalorder %s158, %s159
      %p171 = scmp.eq.s32.totalorder %s23, 2
      %p172 = por %p170, %p171
      %p174 = scmp.ne.s32.totalorder %s159, %s173
      %p175 = scmp.eq.s32.totalorder %s23, 0
      %p176 = por %p174, %p175
      %s178 = sadd.s32 %s177, 1
      %p181 = scmp.eq.s32.totalorder %s17, 2
      %p182 = scmp.ne.s32.totalorder %s177, %s179
      %p183 = scmp.eq.s32.totalorder %s17, 0
      %p184 = por %p182, %p183
      %p185 = scmp.ne.s32.totalorder %s177, %s179
      %p186 = scmp.eq.s32.totalorder %s22, 2
      %p187 = por %p185, %p186
      %p188 = scmp.ne.s32.totalorder %s179, %s180
      %p189 = scmp.eq.s32.totalorder %s22, 0
      %p190 = por %p188, %p189
      %p191 = scmp.ne.s32.totalorder %s179, %s180
      %p192 = scmp.eq.s32.totalorder %s23, 2
      %p193 = por %p191, %p192
      %p195 = scmp.ne.s32.totalorder %s180, %s194
      %p196 = scmp.eq.s32.totalorder %s23, 0
      %p197 = por %p195, %p196
      %s198 = ssub.s32 %s17, %s24
      %p199 = scmp.eq.s32.totalorder %s198, 0
      %s201 = sadd.s32 %s200, 1
      %s202 = scalar_select %p199, %s200, %s201
      %p205 = pneg %p199
      %p206 = scmp.eq.s32.totalorder %s17, 2
      %p207 = por %p205, %p206
      %p208 = scmp.ne.s32.totalorder %s200, %s203
      %p209 = scmp.eq.s32.totalorder %s17, 0
      %p210 = por %p208, %p209
      %p211 = scmp.ne.s32.totalorder %s200, %s203
      %p212 = scmp.eq.s32.totalorder %s22, 2
      %p213 = por %p211, %p212
      %p214 = scmp.ne.s32.totalorder %s203, %s204
      %p215 = scmp.eq.s32.totalorder %s22, 0
      %p216 = por %p214, %p215
      %p217 = scmp.ne.s32.totalorder %s203, %s204
      %p218 = scmp.eq.s32.totalorder %s23, 2
      %p219 = por %p217, %p218
      %p221 = scmp.ne.s32.totalorder %s204, %s220
      %p222 = scmp.eq.s32.totalorder %s23, 0
      %p223 = por %p221, %p222
      %p224 = scmp.le.s32.totalorder 1, %s17
      %p225 = scmp.lt.s32.totalorder %s17, 4
      %p226 = pnand %p224, %p225
      %p227 = pneg %p226
      // Predicated region
      $region9: #{mlp_forward.1} parent=5 // pred_check
        _
      $region10: #{mlp_forward.1} parent=5 // pred_check_branch
        %229 = sbr.rel (%p226) target = $region12
      $region11: #{mlp_forward.1} parent=5 // pred_region
        %s230 = ssub.s32 %s17, 1
        // Predicated region
        $region13: #{mlp_forward.1} parent=11 // pred_check
          %p231 = pneg %p64
        $region14: #{mlp_forward.1} parent=11 // pred_check_branch
          %233 = sbr.rel (%p231) target = $region16
        $region15: #{mlp_forward.1} parent=11 // pred_region
          _
        $region16: #{mlp_forward.1} parent=11 // pred_fallthru
          _
        // Predicated region
        $region17: #{mlp_forward.1} parent=11 // pred_check
          %p234 = pneg %p85
        $region18: #{mlp_forward.1} parent=11 // pred_check_branch
          %236 = sbr.rel (%p234) target = $region20
        $region19: #{mlp_forward.1} parent=11 // pred_region
          _
        $region20: #{mlp_forward.1} parent=11 // pred_fallthru
          _
        // Predicated region
        $region21: #{mlp_forward.1} parent=11 // pred_check
          %p237 = pneg %p106
        $region22: #{mlp_forward.1} parent=11 // pred_check_branch
          %239 = sbr.rel (%p237) target = $region24
        $region23: #{mlp_forward.1} parent=11 // pred_region
          _
        $region24: #{mlp_forward.1} parent=11 // pred_fallthru
          _
        // Predicated region
        $region25: #{mlp_forward.1} parent=11 // pred_check
          %p240 = pneg %p127
        $region26: #{mlp_forward.1} parent=11 // pred_check_branch
          %242 = sbr.rel (%p240) target = $region28
        $region27: #{mlp_forward.1} parent=11 // pred_region
          _
        $region28: #{mlp_forward.1} parent=11 // pred_fallthru
          _
        // Predicated region
        $region29: #{mlp_forward.1} parent=11 // pred_check
          %p243 = pneg %p148
        $region30: #{mlp_forward.1} parent=11 // pred_check_branch
          %245 = sbr.rel (%p243) target = $region32
        $region31: #{mlp_forward.1} parent=11 // pred_region
          _
        $region32: #{mlp_forward.1} parent=11 // pred_fallthru
          _
        // Predicated region
        $region33: #{mlp_forward.1} parent=11 // pred_check
          %p246 = pneg %p169
        $region34: #{mlp_forward.1} parent=11 // pred_check_branch
          %248 = sbr.rel (%p246) target = $region36
        $region35: #{mlp_forward.1} parent=11 // pred_region
          _
        $region36: #{mlp_forward.1} parent=11 // pred_fallthru
          _
        // Predicated region
        $region37: #{mlp_forward.1} parent=11 // pred_check
          %p249 = pneg %p190
        $region38: #{mlp_forward.1} parent=11 // pred_check_branch
          %251 = sbr.rel (%p249) target = $region40
        $region39: #{mlp_forward.1} parent=11 // pred_region
          _
        $region40: #{mlp_forward.1} parent=11 // pred_fallthru
          _
      $region12: #{mlp_forward.1} parent=5 // pred_fallthru
        _
      %p252 = scmp.lt.s32.totalorder %s17, 3
      // Predicated region
      $region41: #{mlp_forward.1} parent=5 // pred_check
        %p253 = pneg %p252
      $region42: #{mlp_forward.1} parent=5 // pred_check_branch
        %255 = sbr.rel (%p253) target = $region44
      $region43: #{mlp_forward.1} parent=5 // pred_region
        // Predicated region
        $region45: #{mlp_forward.1} parent=43 // pred_check
          %p256 = pneg %p37
        $region46: #{mlp_forward.1} parent=43 // pred_check_branch
          %258 = sbr.rel (%p256) target = $region48
        $region47: #{mlp_forward.1} parent=43 // pred_region
          %s259 = smul.u32 16, %s17
          %s260 = ssub.s32 38, %s259
          %p261 = scmp.lt.s32.totalorder %s260, 16
          %s262 = scalar_select %p261, %s260, 16
          %s263 = smul.u32 8, %s262
          %p264 = scmp.lt.s32.totalorder %s259, 37
          %s265 = scalar_select %p264, %s259, 37
          %s266 = smul.addr %s265, 8
          %s267 = scalar_lea.vmem %s0, %s266
          %s268 = smul.u32 16, %s17
          %s269 = ssub.s32 38, %s268
          %p270 = scmp.lt.s32.totalorder %s269, 16
          %s271 = scalar_select %p270, %s269, 16
          %s272 = smul.u32 8, %s271
        $region48: #{mlp_forward.1} parent=43 // pred_fallthru
          _
      $region44: #{mlp_forward.1} parent=5 // pred_fallthru
        _
      %p273 = scmp.le.s32.totalorder 1, %s17
      %p274 = scmp.lt.s32.totalorder %s17, 4
      %p275 = pnand %p273, %p274
      %p276 = pneg %p275
      // Predicated region
      $region49: #{mlp_forward.1} parent=5 // pred_check
        _
      $region50: #{mlp_forward.1} parent=5 // pred_check_branch
        %278 = sbr.rel (%p275) target = $region52
      $region51: #{mlp_forward.1} parent=5 // pred_region
        %s279 = ssub.s32 %s17, 1
        %s280 = smul.u32 16, %s22
        %s281 = ssub.s32 38, %s280
        %p282 = scmp.lt.s32.totalorder %s281, 16
        %s283 = scalar_select %p282, %s281, 16
        %s284 = smul.u32 8, %s283
        %p285 = scmp.lt.s32.totalorder %s280, 37
        %s286 = scalar_select %p285, %s280, 37
        %s287 = smul.addr %s286, 8
        %s288 = scalar_lea.vmem %s0, %s287
        %p289 = pneg %p43
        %p290 = pneg %p40
        %p291 = pneg %p64
        %p292 = pneg %p61
        %p293 = pneg %p85
        %p294 = pneg %p82
        %p295 = pneg %p106
        %p296 = pneg %p103
        %p297 = pneg %p127
        %p298 = pneg %p124
        %p299 = pneg %p148
        %p300 = pneg %p145
        %p301 = pneg %p169
        %p302 = pneg %p166
        %p303 = pneg %p190
        %p304 = pneg %p187
        %p305 = pneg %p216
        %p306 = pneg %p213
        %s307 = sand.u32 %s203, 1
        %s308 = scalar_lea.sflag [#allocation3], %s307
        %s309 = sand.u32 %s203, 1
        %s310 = smul.addr %s309, 2
        %s311 = scalar_lea.vmem [#allocation2], %s310
        %s312 = smul.u32 16, %s22
        %s313 = ssub.s32 38, %s312
        %p314 = scmp.lt.s32.totalorder %s313, 16
        %s315 = scalar_select %p314, %s313, 16
        %s316 = smul.u32 8, %s315
        %p317 = scmp.lt.s32.totalorder %s312, 37
        %s318 = scalar_select %p317, %s312, 37
        %s319 = smul.addr %s318, 8
        %s320 = scalar_lea.vmem %s0, %s319
        %s321 = smul.u32 16, %s22
        %s322 = ssub.s32 38, %s321
        %p323 = scmp.lt.s32.totalorder %s322, 16
        %s324 = scalar_select %p323, %s322, 16
        %s325 = smul.u32 8, %s324
        %v326 = vld [vmem:[%s320] sm:$0xff]
        %v327 = vld [vmem:[%s320 + $0x8] sm:$0xff]
        %v328 = vld [vmem:[%s320 + $0x10] sm:$0xff]
        %v329 = vld [vmem:[%s320 + $0x18] sm:$0xff]
        %v330 = vld [vmem:[%s320 + $0x20] sm:$0xff]
        %v331 = vld [vmem:[%s320 + $0x28] sm:$0xff]
        %v332 = vld [vmem:[%s320 + $0x30] sm:$0xff]
        %v333 = vld [vmem:[%s320 + $0x38] sm:$0xff]
        %v334 = vld [vmem:[%s320 + $0x40] sm:$0xff]
        %v335 = vld [vmem:[%s320 + $0x48] sm:$0xff]
        %v336 = vld [vmem:[%s320 + $0x50] sm:$0xff]
        %v337 = vld [vmem:[%s320 + $0x58] sm:$0xff]
        %v338 = vld [vmem:[%s320 + $0x60] sm:$0xff]
        %v339 = vld [vmem:[%s320 + $0x68] sm:$0xff]
        %v340 = vld [vmem:[%s320 + $0x70] sm:$0xff]
        %v341 = vld [vmem:[%s320 + $0x78] sm:$0xff]
        %v342 = vld [vmem:[%s1] sm:$0x7]
        %v343 = vld [vmem:[%s2] sm:$0x7]
        %345 = vset.pattern.permute.xlu0 0
        %346 = vperm.xlu0 %345, %v343
        %v347 = vpop.permute.xlu0 %346
        %vm349 = vcmask 138240
        %v351 = vsel %vm349, %v342, 0
        %v354 = vsel %vm349, %v326, 0
        %v357 = vsel %vm349, %v327, 0
        %v360 = vsel %vm349, %v328, 0
        %v363 = vsel %vm349, %v329, 0
        %v366 = vsel %vm349, %v330, 0
        %v369 = vsel %vm349, %v331, 0
        %v372 = vsel %vm349, %v332, 0
        %v375 = vsel %vm349, %v333, 0
        %v378 = vsel %vm349, %v334, 0
        %v381 = vsel %vm349, %v335, 0
        %v384 = vsel %vm349, %v336, 0
        %v387 = vsel %vm349, %v337, 0
        %v390 = vsel %vm349, %v338, 0
        %v393 = vsel %vm349, %v339, 0
        %v396 = vsel %vm349, %v340, 0
        %v399 = vsel %vm349, %v341, 0
        %401 = vmatpush.xpose.msra.mxu0 %v399
        %402 = vmatpush.xpose.msra.mxu0 %v396
        %403 = vmatpush.xpose.msra.mxu0 %v393
        %404 = vmatpush.xpose.msra.mxu0 %v390
        %405 = vmatpush.xpose.msra.mxu0 %v387
        %406 = vmatpush.xpose.msra.mxu0 %v384
        %407 = vmatpush.xpose.msra.mxu0 %v381
        %408 = vmatpush.xpose.msra.mxu0 %v378
        %409 = vmatpush.xpose.msra.mxu0 %v375
        %410 = vmatpush.xpose.msra.mxu0 %v372
        %411 = vmatpush.xpose.msra.mxu0 %v369
        %412 = vmatpush.xpose.msra.mxu0 %v366
        %413 = vmatpush.xpose.msra.mxu0 %v363
        %414 = vmatpush.xpose.msra.mxu0 %v360
        %415 = vmatpush.xpose.msra.mxu0 %v357
        %416 = vmatpush.xpose.msra.mxu0 %v354
        %417 = vmatmul.f32.gmra.mxu0 %v351
        %v418 = vpop.f32.mrf.mxu0
        %v419 = vadd.f32 %v347, %v418
        %420 = vdwg.mxu0
        %v421 = vmax.f32 %v419, 0.0
        %v422 = vld [vmem:[%s3] sm:$0xff]
        %v423 = vld [vmem:[%s3 + $0x8] sm:$0x3]
        %v424 = vld [vmem:[%s4] sm:$0xff]
        %v425 = vld [vmem:[%s4 + $0x8] sm:$0x3]
        %vm426 = vcmask 23552
        %v428 = vsel %vm426, %v424, 0
        %v431 = vsel %vm426, %v425, 0
        %vm433 = vcmask 1042432
        %v435 = vsel %vm433, %v421, 0
        %437 = vmatpush.msra.mxu0 0.0
        %438 = vmatpush.msra.mxu0 0.0
        %439 = vmatpush.msra.mxu0 0.0
        %440 = vmatpush.msra.mxu0 0.0
        %441 = vmatpush.msra.mxu0 0.0
        %442 = vmatpush.msra.mxu0 0.0
        %443 = vmatpush.msra.mxu0 0.0
        %444 = vmatpush.msra.mxu0 0.0
        %445 = vmatpush.msra.mxu0 0.0
        %446 = vmatpush.msra.mxu0 0.0
        %447 = vmatpush.msra.mxu0 0.0
        %448 = vmatpush.msra.mxu0 0.0
        %449 = vmatpush.msra.mxu0 0.0
        %450 = vmatpush.msra.mxu0 0.0
        %451 = vmatpush.msra.mxu0 0.0
        %452 = vmatpush.msra.mxu0 %v435
        %453 = vmatmul.f32.gmra.mxu0 %v428
        %v454 = vpop.f32.mrf.mxu0
        %v455 = vadd.f32 0.0, %v454
        %456 = vmatmul.f32.gmra.mxu0 %v431
        %v457 = vpop.f32.mrf.mxu0
        %v458 = vadd.f32 0.0, %v457
        %459 = vdwg.mxu0
        %v461 = vsel %vm349, %v422, 0
        %v464 = vsel %vm349, %v423, 0
        %466 = vmatpush.xpose.msra.mxu0 %v399
        %467 = vmatpush.xpose.msra.mxu0 %v396
        %468 = vmatpush.xpose.msra.mxu0 %v393
        %469 = vmatpush.xpose.msra.mxu0 %v390
        %470 = vmatpush.xpose.msra.mxu0 %v387
        %471 = vmatpush.xpose.msra.mxu0 %v384
        %472 = vmatpush.xpose.msra.mxu0 %v381
        %473 = vmatpush.xpose.msra.mxu0 %v378
        %474 = vmatpush.xpose.msra.mxu0 %v375
        %475 = vmatpush.xpose.msra.mxu0 %v372
        %476 = vmatpush.xpose.msra.mxu0 %v369
        %477 = vmatpush.xpose.msra.mxu0 %v366
        %478 = vmatpush.xpose.msra.mxu0 %v363
        %479 = vmatpush.xpose.msra.mxu0 %v360
        %480 = vmatpush.xpose.msra.mxu0 %v357
        %481 = vmatpush.xpose.msra.mxu0 %v354
        %482 = vmatmul.f32.gmra.mxu0 %v461
        %v483 = vpop.f32.mrf.mxu0
        %v484 = vadd.f32 %v455, %v483
        %485 = vmatmul.f32.gmra.mxu0 %v464
        %v486 = vpop.f32.mrf.mxu0
        %v487 = vadd.f32 %v458, %v486
        %488 = vdwg.mxu0
        %v489 = vld [vmem:[%s5] sm:$0xff]
        %v490 = vld [vmem:[%s5 + $0x8] sm:$0x3]
        %492 = vset.pattern.permute.xlu0 0
        %493 = vperm.xlu0 %492, %v489
        %v494 = vpop.permute.xlu0 %493
        %497 = vset.pattern.permute.xlu0 0
        %498 = vperm.xlu0 %497, %v490
        %v499 = vpop.permute.xlu0 %498
        %v501 = vadd.f32 %v484, %v494
        %v502 = vadd.f32 %v487, %v499
        %v503 = vmax.f32 %v501, 0.0
        %v504 = vmax.f32 %v502, 0.0
        %v505 = vld [vmem:[%s6] sm:$0x3]
        %v506 = vld [vmem:[%s7] sm:$0x3]
        %508 = vset.pattern.permute.xlu0 0
        %509 = vperm.xlu0 %508, %v506
        %v510 = vpop.permute.xlu0 %509
        %vm512 = vcmask 80896
        %v514 = vsel %vm512, %v505, 0
        %vm516 = vcmask 1041408
        %v518 = vsel %vm516, %v504, 0
        %520 = vmatpush.msra.mxu0 0.0
        %521 = vmatpush.msra.mxu0 0.0
        %522 = vmatpush.msra.mxu0 0.0
        %523 = vmatpush.msra.mxu0 0.0
        %524 = vmatpush.msra.mxu0 0.0
        %525 = vmatpush.msra.mxu0 0.0
        %526 = vmatpush.msra.mxu0 0.0
        %527 = vmatpush.msra.mxu0 0.0
        %528 = vmatpush.msra.mxu0 0.0
        %529 = vmatpush.msra.mxu0 0.0
        %530 = vmatpush.msra.mxu0 0.0
        %531 = vmatpush.msra.mxu0 0.0
        %532 = vmatpush.msra.mxu0 0.0
        %533 = vmatpush.msra.mxu0 0.0
        %534 = vmatpush.msra.mxu0 %v518
        %535 = vmatpush.msra.mxu0 %v503
        %536 = vmatmul.f32.gmra.mxu0 %v514
        %v537 = vpop.f32.mrf.mxu0
        %v538 = vadd.f32 %v510, %v537
        %539 = vdwg.mxu0
        %540 = vst [vmem:[%s311] sm:$0x3] %v538
        %s541 = sand.u32 %s203, 1
        %s542 = scalar_lea.sflag [#allocation3], %s541
        %s543 = sand.u32 %s203, 1
        %s544 = smul.addr %s543, 2
        %s545 = scalar_lea.vmem [#allocation2], %s544
        // Predicated region
        $region53: #{mlp_forward.1} parent=51 // pred_check
          %p546 = pneg %p213
        $region54: #{mlp_forward.1} parent=51 // pred_check_branch
          %548 = sbr.rel (%p546) target = $region56
        $region55: #{mlp_forward.1} parent=51 // pred_region
          %550 = vsyncadd %s542, 0
          %s551 = smul.addr %s22, 2
          %s552 = scalar_lea.hbm %s8, %s551
          %s554 = sshll.u32 %s545, 4
          %s555 = int_to_ptr.vmem [resolvable:$true] %s554
          %s556 = sshll.u32 %s552, 4
          %s557 = int_to_ptr.hbm [resolvable:$true] %s556
          %559 = dma.vmem_to_hbm [thread:$0]  %s555, 32, %s557, %s542
        $region56: #{mlp_forward.1} parent=51 // pred_fallthru
          _
      $region52: #{mlp_forward.1} parent=5 // pred_fallthru
        _
      %p560 = scmp.le.s32.totalorder 2, %s17
      // Predicated region
      $region57: #{mlp_forward.1} parent=5 // pred_check
        %p561 = pneg %p560
      $region58: #{mlp_forward.1} parent=5 // pred_check_branch
        %563 = sbr.rel (%p561) target = $region60
      $region59: #{mlp_forward.1} parent=5 // pred_region
        %s564 = ssub.s32 %s17, 2
        // Predicated region
        $region61: #{mlp_forward.1} parent=59 // pred_check
          %p565 = pneg %p219
        $region62: #{mlp_forward.1} parent=59 // pred_check_branch
          %567 = sbr.rel (%p565) target = $region64
        $region63: #{mlp_forward.1} parent=59 // pred_region
          %s568 = sand.u32 %s204, 1
          %s569 = scalar_lea.sflag [#allocation3], %s568
          %s570 = sand.u32 %s204, 1
          %s571 = smul.addr %s570, 2
          %s572 = scalar_lea.vmem [#allocation2], %s571
          %574 = dma.done %s569, 32
        $region64: #{mlp_forward.1} parent=59 // pred_fallthru
          _
      $region60: #{mlp_forward.1} parent=5 // pred_fallthru
        _
    $region6: #{mlp_forward.1} parent=1 // loop_footer
      %s21 = sadd.s32 1, %s17
    $region7: #{mlp_forward.1} parent=1 // loop_footer_branch
      %16 = sbr.rel target = $region3
    $region8: #{mlp_forward.1} parent=1 // loop_exit
      _
    %575 = vsyncpa [#allocation3], 1
    %s576 = scalar_lea.sflag [#allocation3], 1
    %577 = vsyncpa %s576, 1

</llo_original>
